<compile_context>
chip_gen: v5e
topology: v5e:2x2
jax: 0.10.0
libtpu: 0.0.40
codegen_flags: <defaults>
</compile_context>

<pallas_src>
import functools

import jax
import jax.numpy as jnp
from jax.experimental import pallas as pl
from jax.experimental.pallas import tpu as pltpu

NUM_DOMAINS = 4
STRIDE = 16          # hard-coded in the torch module: stride = 16, N == 4 * stride
EPS = 1e-9


def _dsbn_train_kernel(x_ref, w_ref, b_ref, o_ref, *, eps, inv_n):
    # x_ref / o_ref: (64, C) in (64, C) layout -- no wrapper transposes.
    # w_ref / b_ref: (NUM_DOMAINS, C) per-domain affine params.
    # Single grid step; the 4 domains are a fully unrolled static loop so all
    # work stays in one kernel invocation (data = a couple of vregs).
    for d in range(NUM_DOMAINS):
        rows = pl.ds(d * STRIDE, STRIDE)
        xs = x_ref[rows, :].astype(jnp.float32)              # f32 stats (v5e-safe)
        mean = jnp.sum(xs, axis=0, keepdims=True) * inv_n    # (1, C)
        xc = xs - mean                                       # two-pass centered var
        var = jnp.sum(xc * xc, axis=0, keepdims=True) * inv_n
        inv_std = jax.lax.rsqrt(var + eps)                   # EUP slot, ~free
        scale = w_ref[d:d + 1, :].astype(jnp.float32) * inv_std
        shift = b_ref[d:d + 1, :].astype(jnp.float32)
        # Folded affine: one FMA over the tile on the way out.
        # TODO(synk): on v6e/v7x with bf16 inputs the final FMA + store could
        # run in bf16 (packed width); kept f32->cast so v5e stays correct.
        o_ref[rows, :] = (xc * scale + shift).astype(o_ref.dtype)


def dsbn_forward(x, domain_label, weight, bias, *, eps=EPS, validate_domains=False):
    """Training-mode, within_single_batch=True forward of DomainSpecificBatchNorm1d.

    x:            (N, C) with N == 4 * STRIDE, rows [d*16:(d+1)*16] = domain d
    domain_label: (N,) int labels (passed through, like the torch module)
    weight/bias:  (NUM_DOMAINS, C) per-domain BN affine params
    Returns (out, domain_label), mirroring the torch module.
    """
    N, C = x.shape
    assert STRIDE * NUM_DOMAINS == N, "expected 2D input with N == 64"
    if validate_domains:
        # Debug-only: mirrors the torch asserts.  Forces a device->host sync,
        # so it is off by default and must not be used under jit.
        dl = jax.device_get(domain_label)
        for d in range(NUM_DOMAINS):
            assert int(dl[d * STRIDE]) == d

    vmem = pltpu.MemorySpace.VMEM
    out = pl.pallas_call(
        functools.partial(_dsbn_train_kernel, eps=eps, inv_n=1.0 / STRIDE),
        out_shape=jax.ShapeDtypeStruct((N, C), x.dtype),
        in_specs=[pl.BlockSpec(memory_space=vmem),   # x, whole array resident
                  pl.BlockSpec(memory_space=vmem),   # weight
                  pl.BlockSpec(memory_space=vmem)],  # bias
        out_specs=pl.BlockSpec(memory_space=vmem),
    )(x, weight, bias)
    return out, domain_label


def dsbn_forward_stacked(x, domain_label, weight, bias, *, eps=EPS):
    """Batched variant: x is (B, N, C) -- B independent DSBN instances in one
    pallas_call.  Amortizes the fixed launch/DMA cost; the batch axis is marked
    "parallel" so Mosaic can shard it across both TensorCores on v7x."""
    B, N, C = x.shape
    assert STRIDE * NUM_DOMAINS == N, "expected per-instance N == 64"
    out = pl.pallas_call(
        functools.partial(_dsbn_train_kernel, eps=eps, inv_n=1.0 / STRIDE),
        out_shape=jax.ShapeDtypeStruct((B, N, C), x.dtype),
        grid=(B,),
        in_specs=[
            pl.BlockSpec((None, N, C), lambda i: (i, 0, 0)),          # x[i]
            pl.BlockSpec((NUM_DOMAINS, C), lambda i: (0, 0)),         # weight
            pl.BlockSpec((NUM_DOMAINS, C), lambda i: (0, 0)),         # bias
        ],
        out_specs=pl.BlockSpec((None, N, C), lambda i: (i, 0, 0)),
        compiler_params=pltpu.CompilerParams(
            dimension_semantics=("parallel",)),
    )(x, weight, bias)
    return out, domain_label


def _reference(x, weight, bias, eps=EPS):
    chunks = []
    for d in range(NUM_DOMAINS):
        xs = x[d * STRIDE:(d + 1) * STRIDE]
        m = xs.mean(0, keepdims=True)
        v = ((xs - m) ** 2).mean(0, keepdims=True)
        chunks.append((xs - m) / jnp.sqrt(v + eps) * weight[d] + bias[d])
    return jnp.concatenate(chunks, axis=0)


if __name__ == "__main__":
    C = 32
    N = NUM_DOMAINS * STRIDE  # 64, required by the module's asserts
    B = 3                     # instances for the stacked/batched variant

    key = jax.random.PRNGKey(0)
    kx, kw, kb, ks = jax.random.split(key, 4)
    x = jax.random.normal(kx, (N, C), dtype=jnp.float32)
    # Deterministic, non-trivial affine params (BN default init is ones/zeros;
    # perturb so the affine path is actually exercised).
    weight = 1.0 + 0.1 * jax.random.normal(kw, (NUM_DOMAINS, C), dtype=jnp.float32)
    bias = 0.05 * jax.random.normal(kb, (NUM_DOMAINS, C), dtype=jnp.float32)
    domain_label = jnp.repeat(jnp.arange(NUM_DOMAINS, dtype=jnp.int32), STRIDE)

    # --- single-instance path (layout (64, C) end to end, no transposes) ---
    fwd = jax.jit(dsbn_forward)
    out, dl_out = fwd(x, domain_label, weight, bias)
    out = jax.block_until_ready(out)

    ref = _reference(x, weight, bias)
    assert out.shape == (N, C) and out.dtype == x.dtype
    assert jnp.allclose(out, ref, atol=1e-5, rtol=1e-5)
    assert bool(jnp.all(dl_out == domain_label))

    # --- stacked/batched path (grid over instances, parallel axis) ---
    x_stack = jax.random.normal(ks, (B, N, C), dtype=jnp.float32)
    fwd_stacked = jax.jit(dsbn_forward_stacked)
    out_stack, _ = fwd_stacked(x_stack, domain_label, weight, bias)
    out_stack = jax.block_until_ready(out_stack)
    assert out_stack.shape == (B, N, C) and out_stack.dtype == x_stack.dtype
    for b in range(B):
        assert jnp.allclose(out_stack[b], _reference(x_stack[b], weight, bias),
                            atol=1e-5, rtol=1e-5)

    print("KERNEL_OK")
</pallas_src>

<mosaic_0001>
module attributes {stable_mosaic.version = 11 : i64} {
  func.func @_dsbn_train_kernel(%arg0: memref<64x32xf32, #tpu.memory_space<vmem>>, %arg1: memref<4x32xf32, #tpu.memory_space<vmem>>, %arg2: memref<4x32xf32, #tpu.memory_space<vmem>>, %arg3: memref<64x32xf32, #tpu.memory_space<vmem>>) attributes {dimension_semantics = [], scalar_prefetch = 0 : i64, scratch_operands = 0 : i64, tpu.core_type = #tpu.core_type<tc>} {
    %c0 = arith.constant 0 : index
    %c0_0 = arith.constant 0 : index
    %0 = vector.load %arg0[%c0, %c0_0] : memref<64x32xf32, #tpu.memory_space<vmem>>, vector<16x32xf32>
    %cst = arith.constant dense<0.000000e+00> : vector<32xf32>
    %1 = vector.multi_reduction <add>, %0, %cst [0] : vector<16x32xf32> to vector<32xf32>
    %2 = vector.shape_cast %1 : vector<32xf32> to vector<1x32xf32>
    %cst_1 = arith.constant 6.250000e-02 : f32
    %3 = vector.broadcast %cst_1 : f32 to vector<1x32xf32>
    %4 = arith.mulf %2, %3 : vector<1x32xf32>
    %5 = vector.broadcast %4 : vector<1x32xf32> to vector<16x32xf32>
    %6 = arith.subf %0, %5 : vector<16x32xf32>
    %7 = arith.mulf %6, %6 : vector<16x32xf32>
    %cst_2 = arith.constant dense<0.000000e+00> : vector<32xf32>
    %8 = vector.multi_reduction <add>, %7, %cst_2 [0] : vector<16x32xf32> to vector<32xf32>
    %9 = vector.shape_cast %8 : vector<32xf32> to vector<1x32xf32>
    %cst_3 = arith.constant 6.250000e-02 : f32
    %10 = vector.broadcast %cst_3 : f32 to vector<1x32xf32>
    %11 = arith.mulf %9, %10 : vector<1x32xf32>
    %cst_4 = arith.constant 9.99999971E-10 : f32
    %12 = vector.broadcast %cst_4 : f32 to vector<1x32xf32>
    %13 = arith.addf %11, %12 : vector<1x32xf32>
    %14 = math.rsqrt %13 : vector<1x32xf32>
    %c0_5 = arith.constant 0 : index
    %c0_6 = arith.constant 0 : index
    %15 = vector.load %arg1[%c0_5, %c0_6] : memref<4x32xf32, #tpu.memory_space<vmem>>, vector<1x32xf32>
    %16 = arith.mulf %15, %14 : vector<1x32xf32>
    %c0_7 = arith.constant 0 : index
    %c0_8 = arith.constant 0 : index
    %17 = vector.load %arg2[%c0_7, %c0_8] : memref<4x32xf32, #tpu.memory_space<vmem>>, vector<1x32xf32>
    %18 = vector.broadcast %16 : vector<1x32xf32> to vector<16x32xf32>
    %19 = arith.mulf %6, %18 : vector<16x32xf32>
    %20 = vector.broadcast %17 : vector<1x32xf32> to vector<16x32xf32>
    %21 = arith.addf %19, %20 : vector<16x32xf32>
    %c0_9 = arith.constant 0 : index
    %c0_10 = arith.constant 0 : index
    %22 = vector.load %arg3[%c0_9, %c0_10] : memref<64x32xf32, #tpu.memory_space<vmem>>, vector<16x32xf32>
    tpu.vector_store %arg3[%c0_9, %c0_10], %21 {strides = array<i32>} : memref<64x32xf32, #tpu.memory_space<vmem>>, vector<16x32xf32>,
    %c16 = arith.constant 16 : index
    %c0_11 = arith.constant 0 : index
    %23 = vector.load %arg0[%c16, %c0_11] : memref<64x32xf32, #tpu.memory_space<vmem>>, vector<16x32xf32>
    %cst_12 = arith.constant dense<0.000000e+00> : vector<32xf32>
    %24 = vector.multi_reduction <add>, %23, %cst_12 [0] : vector<16x32xf32> to vector<32xf32>
    %25 = vector.shape_cast %24 : vector<32xf32> to vector<1x32xf32>
    %cst_13 = arith.constant 6.250000e-02 : f32
    %26 = vector.broadcast %cst_13 : f32 to vector<1x32xf32>
    %27 = arith.mulf %25, %26 : vector<1x32xf32>
    %28 = vector.broadcast %27 : vector<1x32xf32> to vector<16x32xf32>
    %29 = arith.subf %23, %28 : vector<16x32xf32>
    %30 = arith.mulf %29, %29 : vector<16x32xf32>
    %cst_14 = arith.constant dense<0.000000e+00> : vector<32xf32>
    %31 = vector.multi_reduction <add>, %30, %cst_14 [0] : vector<16x32xf32> to vector<32xf32>
    %32 = vector.shape_cast %31 : vector<32xf32> to vector<1x32xf32>
    %cst_15 = arith.constant 6.250000e-02 : f32
    %33 = vector.broadcast %cst_15 : f32 to vector<1x32xf32>
    %34 = arith.mulf %32, %33 : vector<1x32xf32>
    %cst_16 = arith.constant 9.99999971E-10 : f32
    %35 = vector.broadcast %cst_16 : f32 to vector<1x32xf32>
    %36 = arith.addf %34, %35 : vector<1x32xf32>
    %37 = math.rsqrt %36 : vector<1x32xf32>
    %c1 = arith.constant 1 : index
    %c0_17 = arith.constant 0 : index
    %38 = vector.load %arg1[%c1, %c0_17] : memref<4x32xf32, #tpu.memory_space<vmem>>, vector<1x32xf32>
    %39 = arith.mulf %38, %37 : vector<1x32xf32>
    %c1_18 = arith.constant 1 : index
    %c0_19 = arith.constant 0 : index
    %40 = vector.load %arg2[%c1_18, %c0_19] : memref<4x32xf32, #tpu.memory_space<vmem>>, vector<1x32xf32>
    %41 = vector.broadcast %39 : vector<1x32xf32> to vector<16x32xf32>
    %42 = arith.mulf %29, %41 : vector<16x32xf32>
    %43 = vector.broadcast %40 : vector<1x32xf32> to vector<16x32xf32>
    %44 = arith.addf %42, %43 : vector<16x32xf32>
    %c16_20 = arith.constant 16 : index
    %c0_21 = arith.constant 0 : index
    %45 = vector.load %arg3[%c16_20, %c0_21] : memref<64x32xf32, #tpu.memory_space<vmem>>, vector<16x32xf32>
    tpu.vector_store %arg3[%c16_20, %c0_21], %44 {strides = array<i32>} : memref<64x32xf32, #tpu.memory_space<vmem>>, vector<16x32xf32>,
    %c32 = arith.constant 32 : index
    %c0_22 = arith.constant 0 : index
    %46 = vector.load %arg0[%c32, %c0_22] : memref<64x32xf32, #tpu.memory_space<vmem>>, vector<16x32xf32>
    %cst_23 = arith.constant dense<0.000000e+00> : vector<32xf32>
    %47 = vector.multi_reduction <add>, %46, %cst_23 [0] : vector<16x32xf32> to vector<32xf32>
    %48 = vector.shape_cast %47 : vector<32xf32> to vector<1x32xf32>
    %cst_24 = arith.constant 6.250000e-02 : f32
    %49 = vector.broadcast %cst_24 : f32 to vector<1x32xf32>
    %50 = arith.mulf %48, %49 : vector<1x32xf32>
    %51 = vector.broadcast %50 : vector<1x32xf32> to vector<16x32xf32>
    %52 = arith.subf %46, %51 : vector<16x32xf32>
    %53 = arith.mulf %52, %52 : vector<16x32xf32>
    %cst_25 = arith.constant dense<0.000000e+00> : vector<32xf32>
    %54 = vector.multi_reduction <add>, %53, %cst_25 [0] : vector<16x32xf32> to vector<32xf32>
    %55 = vector.shape_cast %54 : vector<32xf32> to vector<1x32xf32>
    %cst_26 = arith.constant 6.250000e-02 : f32
    %56 = vector.broadcast %cst_26 : f32 to vector<1x32xf32>
    %57 = arith.mulf %55, %56 : vector<1x32xf32>
    %cst_27 = arith.constant 9.99999971E-10 : f32
    %58 = vector.broadcast %cst_27 : f32 to vector<1x32xf32>
    %59 = arith.addf %57, %58 : vector<1x32xf32>
    %60 = math.rsqrt %59 : vector<1x32xf32>
    %c2 = arith.constant 2 : index
    %c0_28 = arith.constant 0 : index
    %61 = vector.load %arg1[%c2, %c0_28] : memref<4x32xf32, #tpu.memory_space<vmem>>, vector<1x32xf32>
    %62 = arith.mulf %61, %60 : vector<1x32xf32>
    %c2_29 = arith.constant 2 : index
    %c0_30 = arith.constant 0 : index
    %63 = vector.load %arg2[%c2_29, %c0_30] : memref<4x32xf32, #tpu.memory_space<vmem>>, vector<1x32xf32>
    %64 = vector.broadcast %62 : vector<1x32xf32> to vector<16x32xf32>
    %65 = arith.mulf %52, %64 : vector<16x32xf32>
    %66 = vector.broadcast %63 : vector<1x32xf32> to vector<16x32xf32>
    %67 = arith.addf %65, %66 : vector<16x32xf32>
    %c32_31 = arith.constant 32 : index
    %c0_32 = arith.constant 0 : index
    %68 = vector.load %arg3[%c32_31, %c0_32] : memref<64x32xf32, #tpu.memory_space<vmem>>, vector<16x32xf32>
    tpu.vector_store %arg3[%c32_31, %c0_32], %67 {strides = array<i32>} : memref<64x32xf32, #tpu.memory_space<vmem>>, vector<16x32xf32>,
    %c48 = arith.constant 48 : index
    %c0_33 = arith.constant 0 : index
    %69 = vector.load %arg0[%c48, %c0_33] : memref<64x32xf32, #tpu.memory_space<vmem>>, vector<16x32xf32>
    %cst_34 = arith.constant dense<0.000000e+00> : vector<32xf32>
    %70 = vector.multi_reduction <add>, %69, %cst_34 [0] : vector<16x32xf32> to vector<32xf32>
    %71 = vector.shape_cast %70 : vector<32xf32> to vector<1x32xf32>
    %cst_35 = arith.constant 6.250000e-02 : f32
    %72 = vector.broadcast %cst_35 : f32 to vector<1x32xf32>
    %73 = arith.mulf %71, %72 : vector<1x32xf32>
    %74 = vector.broadcast %73 : vector<1x32xf32> to vector<16x32xf32>
    %75 = arith.subf %69, %74 : vector<16x32xf32>
    %76 = arith.mulf %75, %75 : vector<16x32xf32>
    %cst_36 = arith.constant dense<0.000000e+00> : vector<32xf32>
    %77 = vector.multi_reduction <add>, %76, %cst_36 [0] : vector<16x32xf32> to vector<32xf32>
    %78 = vector.shape_cast %77 : vector<32xf32> to vector<1x32xf32>
    %cst_37 = arith.constant 6.250000e-02 : f32
    %79 = vector.broadcast %cst_37 : f32 to vector<1x32xf32>
    %80 = arith.mulf %78, %79 : vector<1x32xf32>
    %cst_38 = arith.constant 9.99999971E-10 : f32
    %81 = vector.broadcast %cst_38 : f32 to vector<1x32xf32>
    %82 = arith.addf %80, %81 : vector<1x32xf32>
    %83 = math.rsqrt %82 : vector<1x32xf32>
    %c3 = arith.constant 3 : index
    %c0_39 = arith.constant 0 : index
    %84 = vector.load %arg1[%c3, %c0_39] : memref<4x32xf32, #tpu.memory_space<vmem>>, vector<1x32xf32>
    %85 = arith.mulf %84, %83 : vector<1x32xf32>
    %c3_40 = arith.constant 3 : index
    %c0_41 = arith.constant 0 : index
    %86 = vector.load %arg2[%c3_40, %c0_41] : memref<4x32xf32, #tpu.memory_space<vmem>>, vector<1x32xf32>
    %87 = vector.broadcast %85 : vector<1x32xf32> to vector<16x32xf32>
    %88 = arith.mulf %75, %87 : vector<16x32xf32>
    %89 = vector.broadcast %86 : vector<1x32xf32> to vector<16x32xf32>
    %90 = arith.addf %88, %89 : vector<16x32xf32>
    %c48_42 = arith.constant 48 : index
    %c0_43 = arith.constant 0 : index
    %91 = vector.load %arg3[%c48_42, %c0_43] : memref<64x32xf32, #tpu.memory_space<vmem>>, vector<16x32xf32>
    tpu.vector_store %arg3[%c48_42, %c0_43], %90 {strides = array<i32>} : memref<64x32xf32, #tpu.memory_space<vmem>>, vector<16x32xf32>,
    return
  }
}

</mosaic_0001>

<llo_original>
// kernel: dsbn_forward.1
$region0: #{dsbn_forward.1}
  #allocation0 [shape = 'u32[]', space=smem, size = 0x4, offset = 0x4, fixed_abs, tag = 'smem constant byte address 0x4 - core index']
  #allocation1 [shape = 'u32[72,128]{1,0:T(1,128)}', space=vmem, size = 0x9000, scoped, tag = 'internal scratch']
  %s0 = inlined_call_operand.vmem [shape: f32[64,32], index: 0, kind: input, shape index: {}]
  %s1 = inlined_call_operand.vmem [shape: f32[4,32], index: 1, kind: input, shape index: {}]
  %s2 = inlined_call_operand.vmem [shape: f32[4,32], index: 2, kind: input, shape index: {}]
  %s3 = inlined_call_operand.vmem [shape: f32[64,32], index: 3, kind: output, shape index: {}]
  %s4 = sld [smem:[#allocation0]]
  $region22: #{dsbn_forward.1} parent=0
    _
  %s6 = ssub.s32 1, %s4
  %s7 = scalar_select 0, %s6, %s4
  // Predicated region
  $region2: #{dsbn_forward.1} parent=0 // pred_check
    _
  $region3: #{dsbn_forward.1} parent=0 // pred_check_branch
    %9 = sbr.rel (0) target = $region5
  $region4: #{dsbn_forward.1} parent=0 // pred_region
    _
  $region5: #{dsbn_forward.1} parent=0 // pred_fallthru
    _
  // Predicated region
  $region6: #{dsbn_forward.1} parent=0 // pred_check
    _
  $region7: #{dsbn_forward.1} parent=0 // pred_check_branch
    %11 = sbr.rel (0) target = $region9
  $region8: #{dsbn_forward.1} parent=0 // pred_region
    _
  $region9: #{dsbn_forward.1} parent=0 // pred_fallthru
    _
  // Predicated region
  $region10: #{dsbn_forward.1} parent=0 // pred_check
    _
  $region11: #{dsbn_forward.1} parent=0 // pred_check_branch
    %13 = sbr.rel (0) target = $region13
  $region12: #{dsbn_forward.1} parent=0 // pred_region
    _
  $region13: #{dsbn_forward.1} parent=0 // pred_fallthru
    _
  %v14 = vld [vmem:[%s0] sm:$0xff]
  %v15 = vld [vmem:[%s0 + $0x8] sm:$0xff]
  %vm16 = vcmask 261120
  %v17 = vsel %vm16, %v14, 0.0
  %v18 = vsel %vm16, %v15, 0.0
  %v19 = vadd.f32 %v17, %v18
  %v20 = vrot.slane %v19, 4
  %v21 = vadd.f32 %v19, %v20
  %v22 = vrot.slane %v21, 2
  %v23 = vadd.f32 %v21, %v22
  %v24 = vrot.slane %v23, 1
  %v25 = vadd.f32 %v23, %v24
  %v26 = vmul.f32 %v25, 0.0625
  %v27 = vsub.f32 %v14, %v26
  %v28 = vsub.f32 %v15, %v26
  %v29 = vmul.f32 %v27, %v27
  %v30 = vmul.f32 %v28, %v28
  %v31 = vsel %vm16, %v29, 0.0
  %v32 = vsel %vm16, %v30, 0.0
  %v33 = vadd.f32 %v31, %v32
  %v34 = vrot.slane %v33, 4
  %v35 = vadd.f32 %v33, %v34
  %v36 = vrot.slane %v35, 2
  %v37 = vadd.f32 %v35, %v36
  %v38 = vrot.slane %v37, 1
  %v39 = vadd.f32 %v37, %v38
  %v40 = vmul.f32 %v39, 0.0625
  %v41 = vadd.f32 %v40, 1e-09
  %v42 = vrsqrt.pop %v41
  %v43 = vmul.f32 %v42, %v41
  %v44 = vmul.f32 %v43, %v42
  %v45 = vmul.f32 0.5, %v44
  %v46 = vsub.f32 1.5, %v45
  %v47 = vmul.f32 %v42, %v46
  %vm48 = vweird.f32 %v41
  %vm49 = vweird.f32 %v42
  %vm50 = vmor %vm48, %vm49
  %v51 = vsel %vm50, %v42, %v47
  %v52 = vld [vmem:[%s1] sm:$0x1]
  %v53 = vmul.f32 %v52, %v51
  %v54 = vld [vmem:[%s2] sm:$0x1]
  %v55 = vperm.slane %v53, 0
  %v56 = vmul.f32 %v27, %v55
  %v57 = vmul.f32 %v28, %v55
  %v58 = vperm.slane %v54, 0
  %v59 = vadd.f32 %v56, %v58
  %v60 = vadd.f32 %v57, %v58
  %61 = vst.msk [vmem:[%s3] sm:$0xff] %vm16, %v59
  %62 = vst.msk [vmem:[%s3 + $0x8] sm:$0xff] %vm16, %v60
  %v63 = vld [vmem:[%s0 + $0x10] sm:$0xff]
  %v64 = vld [vmem:[%s0 + $0x18] sm:$0xff]
  %v65 = vsel %vm16, %v63, 0.0
  %v66 = vsel %vm16, %v64, 0.0
  %v67 = vadd.f32 %v65, %v66
  %v68 = vrot.slane %v67, 4
  %v69 = vadd.f32 %v67, %v68
  %v70 = vrot.slane %v69, 2
  %v71 = vadd.f32 %v69, %v70
  %v72 = vrot.slane %v71, 1
  %v73 = vadd.f32 %v71, %v72
  %v74 = vmul.f32 %v73, 0.0625
  %v75 = vsub.f32 %v63, %v74
  %v76 = vsub.f32 %v64, %v74
  %v77 = vmul.f32 %v75, %v75
  %v78 = vmul.f32 %v76, %v76
  %v79 = vsel %vm16, %v77, 0.0
  %v80 = vsel %vm16, %v78, 0.0
  %v81 = vadd.f32 %v79, %v80
  %v82 = vrot.slane %v81, 4
  %v83 = vadd.f32 %v81, %v82
  %v84 = vrot.slane %v83, 2
  %v85 = vadd.f32 %v83, %v84
  %v86 = vrot.slane %v85, 1
  %v87 = vadd.f32 %v85, %v86
  %v88 = vmul.f32 %v87, 0.0625
  %v89 = vadd.f32 %v88, 1e-09
  %v90 = vrsqrt.pop %v89
  %v91 = vmul.f32 %v90, %v89
  %v92 = vmul.f32 %v91, %v90
  %v93 = vmul.f32 0.5, %v92
  %v94 = vsub.f32 1.5, %v93
  %v95 = vmul.f32 %v90, %v94
  %vm96 = vweird.f32 %v89
  %vm97 = vweird.f32 %v90
  %vm98 = vmor %vm96, %vm97
  %v99 = vsel %vm98, %v90, %v95
  %v100 = vld [vmem:[%s1 + $0x1] sm:$0x1]
  %v101 = vmul.f32 %v100, %v99
  %v102 = vld [vmem:[%s2 + $0x1] sm:$0x1]
  %v103 = vperm.slane %v101, 0
  %v104 = vmul.f32 %v75, %v103
  %v105 = vmul.f32 %v76, %v103
  %v106 = vperm.slane %v102, 0
  %v107 = vadd.f32 %v104, %v106
  %v108 = vadd.f32 %v105, %v106
  %109 = vst.msk [vmem:[%s3 + $0x10] sm:$0xff] %vm16, %v107
  %110 = vst.msk [vmem:[%s3 + $0x18] sm:$0xff] %vm16, %v108
  %v111 = vld [vmem:[%s0 + $0x20] sm:$0xff]
  %v112 = vld [vmem:[%s0 + $0x28] sm:$0xff]
  %v113 = vsel %vm16, %v111, 0.0
  %v114 = vsel %vm16, %v112, 0.0
  %v115 = vadd.f32 %v113, %v114
  %v116 = vrot.slane %v115, 4
  %v117 = vadd.f32 %v115, %v116
  %v118 = vrot.slane %v117, 2
  %v119 = vadd.f32 %v117, %v118
  %v120 = vrot.slane %v119, 1
  %v121 = vadd.f32 %v119, %v120
  %v122 = vmul.f32 %v121, 0.0625
  %v123 = vsub.f32 %v111, %v122
  %v124 = vsub.f32 %v112, %v122
  %v125 = vmul.f32 %v123, %v123
  %v126 = vmul.f32 %v124, %v124
  %v127 = vsel %vm16, %v125, 0.0
  %v128 = vsel %vm16, %v126, 0.0
  %v129 = vadd.f32 %v127, %v128
  %v130 = vrot.slane %v129, 4
  %v131 = vadd.f32 %v129, %v130
  %v132 = vrot.slane %v131, 2
  %v133 = vadd.f32 %v131, %v132
  %v134 = vrot.slane %v133, 1
  %v135 = vadd.f32 %v133, %v134
  %v136 = vmul.f32 %v135, 0.0625
  %v137 = vadd.f32 %v136, 1e-09
  %v138 = vrsqrt.pop %v137
  %v139 = vmul.f32 %v138, %v137
  %v140 = vmul.f32 %v139, %v138
  %v141 = vmul.f32 0.5, %v140
  %v142 = vsub.f32 1.5, %v141
  %v143 = vmul.f32 %v138, %v142
  %vm144 = vweird.f32 %v137
  %vm145 = vweird.f32 %v138
  %vm146 = vmor %vm144, %vm145
  %v147 = vsel %vm146, %v138, %v143
  %v148 = vld [vmem:[%s1 + $0x2] sm:$0x1]
  %v149 = vmul.f32 %v148, %v147
  %v150 = vld [vmem:[%s2 + $0x2] sm:$0x1]
  %v151 = vperm.slane %v149, 0
  %v152 = vmul.f32 %v123, %v151
  %v153 = vmul.f32 %v124, %v151
  %v154 = vperm.slane %v150, 0
  %v155 = vadd.f32 %v152, %v154
  %v156 = vadd.f32 %v153, %v154
  %157 = vst.msk [vmem:[%s3 + $0x20] sm:$0xff] %vm16, %v155
  %158 = vst.msk [vmem:[%s3 + $0x28] sm:$0xff] %vm16, %v156
  %v159 = vld [vmem:[%s0 + $0x30] sm:$0xff]
  %v160 = vld [vmem:[%s0 + $0x38] sm:$0xff]
  %v161 = vsel %vm16, %v159, 0.0
  %v162 = vsel %vm16, %v160, 0.0
  %v163 = vadd.f32 %v161, %v162
  %v164 = vrot.slane %v163, 4
  %v165 = vadd.f32 %v163, %v164
  %v166 = vrot.slane %v165, 2
  %v167 = vadd.f32 %v165, %v166
  %v168 = vrot.slane %v167, 1
  %v169 = vadd.f32 %v167, %v168
  %v170 = vmul.f32 %v169, 0.0625
  %v171 = vsub.f32 %v159, %v170
  %v172 = vsub.f32 %v160, %v170
  %v173 = vmul.f32 %v171, %v171
  %v174 = vmul.f32 %v172, %v172
  %v175 = vsel %vm16, %v173, 0.0
  %v176 = vsel %vm16, %v174, 0.0
  %v177 = vadd.f32 %v175, %v176
  %v178 = vrot.slane %v177, 4
  %v179 = vadd.f32 %v177, %v178
  %v180 = vrot.slane %v179, 2
  %v181 = vadd.f32 %v179, %v180
  %v182 = vrot.slane %v181, 1
  %v183 = vadd.f32 %v181, %v182
  %v184 = vmul.f32 %v183, 0.0625
  %v185 = vadd.f32 %v184, 1e-09
  %v186 = vrsqrt.pop %v185
  %v187 = vmul.f32 %v186, %v185
  %v188 = vmul.f32 %v187, %v186
  %v189 = vmul.f32 0.5, %v188
  %v190 = vsub.f32 1.5, %v189
  %v191 = vmul.f32 %v186, %v190
  %vm192 = vweird.f32 %v185
  %vm193 = vweird.f32 %v186
  %vm194 = vmor %vm192, %vm193
  %v195 = vsel %vm194, %v186, %v191
  %v196 = vld [vmem:[%s1 + $0x3] sm:$0x1]
  %v197 = vmul.f32 %v196, %v195
  %v198 = vld [vmem:[%s2 + $0x3] sm:$0x1]
  %v199 = vperm.slane %v197, 0
  %v200 = vmul.f32 %v171, %v199
  %v201 = vmul.f32 %v172, %v199
  %v202 = vperm.slane %v198, 0
  %v203 = vadd.f32 %v200, %v202
  %v204 = vadd.f32 %v201, %v202
  %205 = vst.msk [vmem:[%s3 + $0x30] sm:$0xff] %vm16, %v203
  %206 = vst.msk [vmem:[%s3 + $0x38] sm:$0xff] %vm16, %v204
  // Predicated region
  $region14: #{dsbn_forward.1} parent=0 // pred_check
    _
  $region15: #{dsbn_forward.1} parent=0 // pred_check_branch
    %208 = sbr.rel (0) target = $region17
  $region16: #{dsbn_forward.1} parent=0 // pred_region
    _
  $region17: #{dsbn_forward.1} parent=0 // pred_fallthru
    _
  // Predicated region
  $region18: #{dsbn_forward.1} parent=0 // pred_check
    _
  $region19: #{dsbn_forward.1} parent=0 // pred_check_branch
    %210 = sbr.rel (0) target = $region21
  $region20: #{dsbn_forward.1} parent=0 // pred_region
    _
  $region21: #{dsbn_forward.1} parent=0 // pred_fallthru
    _

</llo_original>
